<compile_context>
chip_gen: v6e
topology: v6e:2x2x1
jax: 0.10.0
libtpu: 0.0.40
codegen_flags: <defaults>
</compile_context>

<pallas_src>
import jax
import jax.numpy as jnp
from jax import lax
from jax.experimental import pallas as pl
from jax.experimental.pallas import tpu as pltpu

# Module-level constants from the original metadata_encoder.py (chosen here).
OUTPUT_FTR = 64   # hidden width of the first Linear
OUTPUT_DIM = 32   # default out_dim

_LANE = 128       # TPU lane width
_SUBLANE = 8      # TPU sublane width


def _mlp_kernel(x_ref, w1_ref, b1_ref, w2_ref, b2_ref, o_ref):
    # x:  (TB, D_in)         w1: (H_p, D_in)    b1: (1, H_p)
    # w2: (D_out, H_p)       b2: (1, D_out)     o:  (TB, D_out)
    # Weights stay in PyTorch (out_features, in_features) layout; contract on
    # axis 1 of both operands (y = x @ W^T) directly on the MXU, f32 all the way.
    x = x_ref[...]

    h = lax.dot_general(
        x,
        w1_ref[...],
        dimension_numbers=(((1,), (1,)), ((), ())),
        preferred_element_type=jnp.float32,
    )
    h = jnp.maximum(h + b1_ref[...], 0.0)

    y = lax.dot_general(
        h,
        w2_ref[...],
        dimension_numbers=(((1,), (1,)), ((), ())),
        preferred_element_type=jnp.float32,
    )
    o_ref[...] = (y + b2_ref[...]).astype(o_ref.dtype)


def _pick_batch_tile(B, block_batch):
    """Choose the batch tile size TB (a multiple of 8, or the whole batch)."""
    if B <= 2 * _SUBLANE or B > block_batch:
        # Tiny batch: single tile.  Huge batch: max-size tiles.
        return min(B, block_batch)
    # Mid-sized batch: split into (at least) 2 grid steps so the "parallel"
    # batch axis can be sharded across v7x's two TensorCores.
    half = -(-B // 2)
    return -(-half // _SUBLANE) * _SUBLANE


def mushroom_tabular_encoder(x, w1, b1, w2, b2, *, block_batch=4096):
    """x: (B, input_dim); w1: (output_ftr, input_dim); b1: (output_ftr,);
    w2: (out_dim, output_ftr); b2: (out_dim,). Returns (B, out_dim)."""
    B, D_in = x.shape
    H = w1.shape[0]
    D_out = w2.shape[0]

    # Pad only the hidden width (VMEM-resident intermediate) to 128 lanes.
    # Padded hidden units get bias 0 -> ReLU 0 -> multiply zero w2 columns,
    # so results are unchanged.  The output width is left at its real size.
    H_p = max(_LANE, -(-H // _LANE) * _LANE)

    f32 = jnp.float32
    w1_p = jnp.zeros((H_p, D_in), f32).at[:H, :].set(w1.astype(f32))
    b1_p = jnp.zeros((1, H_p), f32).at[0, :H].set(b1.astype(f32))
    w2_p = jnp.zeros((D_out, H_p), f32).at[:, :H].set(w2.astype(f32))
    b2_p = b2.astype(f32).reshape(1, D_out)

    TB = _pick_batch_tile(B, block_batch)
    grid = (pl.cdiv(B, TB),)

    out = pl.pallas_call(
        _mlp_kernel,
        out_shape=jax.ShapeDtypeStruct((B, D_out), x.dtype),
        grid=grid,
        in_specs=[
            pl.BlockSpec((TB, D_in), lambda i: (i, 0)),     # x: tiled over batch
            pl.BlockSpec((H_p, D_in), lambda i: (0, 0)),    # w1: VMEM-resident
            pl.BlockSpec((1, H_p), lambda i: (0, 0)),       # b1: VMEM-resident
            pl.BlockSpec((D_out, H_p), lambda i: (0, 0)),   # w2: VMEM-resident
            pl.BlockSpec((1, D_out), lambda i: (0, 0)),     # b2: VMEM-resident
        ],
        out_specs=pl.BlockSpec((TB, D_out), lambda i: (i, 0)),
        compiler_params=pltpu.CompilerParams(
            # Batch axis is embarrassingly parallel -> lets v7x's two
            # TensorCores split grid steps; harmless on v5e/v6e.
            dimension_semantics=("parallel",),
        ),
    )(x, w1_p, b1_p, w2_p, b2_p)
    return out


def _reference(x, w1, b1, w2, b2):
    h = jnp.maximum(x @ w1.T + b1, 0.0)
    return h @ w2.T + b2


if __name__ == "__main__":
    key = jax.random.PRNGKey(0)
    B, INPUT_DIM = 8, 16

    k_x, k_w1, k_b1, k_w2, k_b2 = jax.random.split(key, 5)
    x = jax.random.normal(k_x, (B, INPUT_DIM), dtype=jnp.float32)

    # Deterministic synthetic parameters (uniform, roughly Kaiming-scaled).
    lim1 = 1.0 / (INPUT_DIM ** 0.5)
    w1 = jax.random.uniform(k_w1, (OUTPUT_FTR, INPUT_DIM), jnp.float32, -lim1, lim1)
    b1 = jax.random.uniform(k_b1, (OUTPUT_FTR,), jnp.float32, -lim1, lim1)
    lim2 = 1.0 / (OUTPUT_FTR ** 0.5)
    w2 = jax.random.uniform(k_w2, (OUTPUT_DIM, OUTPUT_FTR), jnp.float32, -lim2, lim2)
    b2 = jax.random.uniform(k_b2, (OUTPUT_DIM,), jnp.float32, -lim2, lim2)

    y = mushroom_tabular_encoder(x, w1, b1, w2, b2)
    jax.block_until_ready(y)

    y_ref = _reference(x, w1, b1, w2, b2)
    assert y.shape == (B, OUTPUT_DIM)
    # f32 MXU operands with f32 accumulation -> tight tolerance vs f32 ref.
    assert jnp.allclose(y, y_ref, atol=1e-4, rtol=1e-4), "mismatch vs reference"

    print("KERNEL_OK")
</pallas_src>

<mosaic_0001>
module attributes {stable_mosaic.version = 11 : i64} {
  func.func @_mlp_kernel(%arg0: i32, %arg1: memref<8x16xf32, #tpu.memory_space<vmem>>, %arg2: memref<128x16xf32, #tpu.memory_space<vmem>>, %arg3: memref<1x128xf32, #tpu.memory_space<vmem>>, %arg4: memref<32x128xf32, #tpu.memory_space<vmem>>, %arg5: memref<1x32xf32, #tpu.memory_space<vmem>>, %arg6: memref<8x32xf32, #tpu.memory_space<vmem>>) attributes {dimension_semantics = [#tpu.dimension_semantics<parallel>], iteration_bounds = array<i64: 1>, scalar_prefetch = 0 : i64, scratch_operands = 0 : i64, tpu.core_type = #tpu.core_type<tc>, window_params = [{transform_indices = @transform_0, window_bounds = array<i64: 8, 16>}, {pipeline_mode = #tpu.pipeline_mode<synchronous>, transform_indices = @transform_1, window_bounds = array<i64: 128, 16>}, {pipeline_mode = #tpu.pipeline_mode<synchronous>, transform_indices = @transform_2, window_bounds = array<i64: 1, 128>}, {pipeline_mode = #tpu.pipeline_mode<synchronous>, transform_indices = @transform_3, window_bounds = array<i64: 32, 128>}, {pipeline_mode = #tpu.pipeline_mode<synchronous>, transform_indices = @transform_4, window_bounds = array<i64: 1, 32>}, {transform_indices = @transform_5, window_bounds = array<i64: 8, 32>}]} {
    %c0 = arith.constant 0 : index
    %c0_0 = arith.constant 0 : index
    %0 = vector.load %arg1[%c0, %c0_0] : memref<8x16xf32, #tpu.memory_space<vmem>>, vector<8x16xf32>
    %c0_1 = arith.constant 0 : index
    %c0_2 = arith.constant 0 : index
    %1 = vector.load %arg2[%c0_1, %c0_2] : memref<128x16xf32, #tpu.memory_space<vmem>>, vector<128x16xf32>
    %cst = arith.constant dense<0.000000e+00> : vector<8x128xf32>
    %2 = tpu.matmul %0, %1, %cst {dimension_numbers = #tpu.dot_dimension_numbers<[1], [1], [0], [0], [0, 0, 1, 0], [], []>} : vector<8x16xf32>, vector<128x16xf32>, vector<8x128xf32> -> vector<8x128xf32>
    %c0_3 = arith.constant 0 : index
    %c0_4 = arith.constant 0 : index
    %3 = vector.load %arg3[%c0_3, %c0_4] : memref<1x128xf32, #tpu.memory_space<vmem>>, vector<1x128xf32>
    %4 = vector.broadcast %3 : vector<1x128xf32> to vector<8x128xf32>
    %5 = arith.addf %2, %4 : vector<8x128xf32>
    %cst_5 = arith.constant 0.000000e+00 : f32
    %6 = vector.broadcast %cst_5 : f32 to vector<8x128xf32>
    %7 = arith.maximumf %5, %6 : vector<8x128xf32>
    %c0_6 = arith.constant 0 : index
    %c0_7 = arith.constant 0 : index
    %8 = vector.load %arg4[%c0_6, %c0_7] : memref<32x128xf32, #tpu.memory_space<vmem>>, vector<32x128xf32>
    %cst_8 = arith.constant dense<0.000000e+00> : vector<8x32xf32>
    %9 = tpu.matmul %7, %8, %cst_8 {dimension_numbers = #tpu.dot_dimension_numbers<[1], [1], [0], [0], [0, 0, 1, 0], [], []>} : vector<8x128xf32>, vector<32x128xf32>, vector<8x32xf32> -> vector<8x32xf32>
    %c0_9 = arith.constant 0 : index
    %c0_10 = arith.constant 0 : index
    %10 = vector.load %arg5[%c0_9, %c0_10] : memref<1x32xf32, #tpu.memory_space<vmem>>, vector<1x32xf32>
    %11 = vector.broadcast %10 : vector<1x32xf32> to vector<8x32xf32>
    %12 = arith.addf %9, %11 : vector<8x32xf32>
    %c0_11 = arith.constant 0 : index
    %c0_12 = arith.constant 0 : index
    %13 = vector.load %arg6[%c0_11, %c0_12] : memref<8x32xf32, #tpu.memory_space<vmem>>, vector<8x32xf32>
    tpu.vector_store %arg6[%c0_11, %c0_12], %12 {strides = array<i32>} : memref<8x32xf32, #tpu.memory_space<vmem>>, vector<8x32xf32>,
    return
  }
  func.func @transform_0(%arg0: i32) -> (i32, i32) {
    %c0_i32 = arith.constant 0 : i32
    %c0_i32_0 = arith.constant 0 : i32
    return %arg0, %c0_i32 : i32, i32
  }
  func.func @transform_1(%arg0: i32) -> (i32, i32) {
    %c0_i32 = arith.constant 0 : i32
    %c0_i32_0 = arith.constant 0 : i32
    %c0_i32_1 = arith.constant 0 : i32
    return %c0_i32, %c0_i32_0 : i32, i32
  }
  func.func @transform_2(%arg0: i32) -> (i32, i32) {
    %c0_i32 = arith.constant 0 : i32
    %c0_i32_0 = arith.constant 0 : i32
    %c0_i32_1 = arith.constant 0 : i32
    return %c0_i32, %c0_i32_0 : i32, i32
  }
  func.func @transform_3(%arg0: i32) -> (i32, i32) {
    %c0_i32 = arith.constant 0 : i32
    %c0_i32_0 = arith.constant 0 : i32
    %c0_i32_1 = arith.constant 0 : i32
    return %c0_i32, %c0_i32_0 : i32, i32
  }
  func.func @transform_4(%arg0: i32) -> (i32, i32) {
    %c0_i32 = arith.constant 0 : i32
    %c0_i32_0 = arith.constant 0 : i32
    %c0_i32_1 = arith.constant 0 : i32
    return %c0_i32, %c0_i32_0 : i32, i32
  }
  func.func @transform_5(%arg0: i32) -> (i32, i32) {
    %c0_i32 = arith.constant 0 : i32
    %c0_i32_0 = arith.constant 0 : i32
    return %arg0, %c0_i32 : i32, i32
  }
}

</mosaic_0001>

<llo_original>
// kernel: tpu_custom_call.1
$region0: #{tpu_custom_call.1}
  #allocation0 [shape = 'u32[]', space=smem, size = 0x4, offset = 0x4, fixed_abs, tag = 'smem constant byte address 0x4 - core index']
  #allocation1 [shape = 'u32[144,128]{1,0:T(1,128)}', space=vmem, size = 0x12000, scoped, tag = 'internal scratch']
  %s0 = inlined_call_operand.vmem [shape: f32[8,16], index: 0, kind: input, shape index: {}]
  %s1 = inlined_call_operand.vmem [shape: f32[128,16], index: 1, kind: input, shape index: {}]
  %s2 = inlined_call_operand.vmem [shape: f32[1,128], index: 2, kind: input, shape index: {}]
  %s3 = inlined_call_operand.vmem [shape: f32[32,128], index: 3, kind: input, shape index: {}]
  %s4 = inlined_call_operand.vmem [shape: f32[1,32], index: 4, kind: input, shape index: {}]
  %s5 = inlined_call_operand.hbm [shape: f32[8,32], index: 5, kind: output, shape index: {}]
  %s6 = sld [smem:[#allocation0]]
  $region30: #{tpu_custom_call.1} parent=0
    _
  %s8 = ssub.s32 1, %s6
  %s9 = scalar_select 0, %s8, %s6
  $region1: #{tpu_custom_call.1} parent=0
    #allocation2 [shape = 'u8[4096]{0}', space=vmem, size = 0x1000, scoped, tag = 'output window, operand 0, single buffered']
    #allocation3 [shape = 's32[1]{0}', space=sflag, size = 0x4, scoped, tag = 'scoped memory for tpu_custom_call.1']
    %10 = vsyncpa [#allocation3], 0
    // Predicated region
    $region2: #{tpu_custom_call.1} parent=1 // pred_check
      _
    $region3: #{tpu_custom_call.1} parent=1 // pred_check_branch
      %12 = sbr.rel (0) target = $region5
    $region4: #{tpu_custom_call.1} parent=1 // pred_region
      _
    $region5: #{tpu_custom_call.1} parent=1 // pred_fallthru
      _
    // Predicated region
    $region6: #{tpu_custom_call.1} parent=1 // pred_check
      _
    $region7: #{tpu_custom_call.1} parent=1 // pred_check_branch
      %14 = sbr.rel (0) target = $region9
    $region8: #{tpu_custom_call.1} parent=1 // pred_region
      _
    $region9: #{tpu_custom_call.1} parent=1 // pred_fallthru
      _
    // Predicated region
    $region10: #{tpu_custom_call.1} parent=1 // pred_check
      _
    $region11: #{tpu_custom_call.1} parent=1 // pred_check_branch
      %16 = sbr.rel (0) target = $region13
    $region12: #{tpu_custom_call.1} parent=1 // pred_region
      _
    $region13: #{tpu_custom_call.1} parent=1 // pred_fallthru
      _
    // Predicated region
    $region14: #{tpu_custom_call.1} parent=1 // pred_check
      _
    $region15: #{tpu_custom_call.1} parent=1 // pred_check_branch
      %18 = sbr.rel (0) target = $region17
    $region16: #{tpu_custom_call.1} parent=1 // pred_region
      _
    $region17: #{tpu_custom_call.1} parent=1 // pred_fallthru
      _
    // Predicated region
    $region18: #{tpu_custom_call.1} parent=1 // pred_check
      _
    $region19: #{tpu_custom_call.1} parent=1 // pred_check_branch
      %20 = sbr.rel (0) target = $region21
    $region20: #{tpu_custom_call.1} parent=1 // pred_region
      _
    $region21: #{tpu_custom_call.1} parent=1 // pred_fallthru
      _
    %v21 = vld [vmem:[%s0] sm:$0xff]
    %v22 = vld [vmem:[%s1] sm:$0xff]
    %v23 = vld [vmem:[%s1 + $0x8] sm:$0xff]
    %v24 = vld [vmem:[%s1 + $0x10] sm:$0xff]
    %v25 = vld [vmem:[%s1 + $0x18] sm:$0xff]
    %v26 = vld [vmem:[%s1 + $0x20] sm:$0xff]
    %v27 = vld [vmem:[%s1 + $0x28] sm:$0xff]
    %v28 = vld [vmem:[%s1 + $0x30] sm:$0xff]
    %v29 = vld [vmem:[%s1 + $0x38] sm:$0xff]
    %v30 = vld [vmem:[%s1 + $0x40] sm:$0xff]
    %v31 = vld [vmem:[%s1 + $0x48] sm:$0xff]
    %v32 = vld [vmem:[%s1 + $0x50] sm:$0xff]
    %v33 = vld [vmem:[%s1 + $0x58] sm:$0xff]
    %v34 = vld [vmem:[%s1 + $0x60] sm:$0xff]
    %v35 = vld [vmem:[%s1 + $0x68] sm:$0xff]
    %v36 = vld [vmem:[%s1 + $0x70] sm:$0xff]
    %v37 = vld [vmem:[%s1 + $0x78] sm:$0xff]
    %v38 = vld [vmem:[%s2] sm:$0x1]
    %v40 = vlaneseq
    %v41 = vshrl.u32 %v40, 7
    %v42 = vsub.s32 0, %v41
    %v43 = vrot.slane %v38, %v42
    %vm45 = vcmask 130048
    %v47 = vsel %vm45, %v21, 0
    %v50 = vsel %vm45, %v22, 0
    %v53 = vsel %vm45, %v23, 0
    %v56 = vsel %vm45, %v24, 0
    %v59 = vsel %vm45, %v25, 0
    %v62 = vsel %vm45, %v26, 0
    %v65 = vsel %vm45, %v27, 0
    %v68 = vsel %vm45, %v28, 0
    %v71 = vsel %vm45, %v29, 0
    %v74 = vsel %vm45, %v30, 0
    %v77 = vsel %vm45, %v31, 0
    %v80 = vsel %vm45, %v32, 0
    %v83 = vsel %vm45, %v33, 0
    %v86 = vsel %vm45, %v34, 0
    %v89 = vsel %vm45, %v35, 0
    %v92 = vsel %vm45, %v36, 0
    %v95 = vsel %vm45, %v37, 0
    %97 = vmatprep.subr.mxu0 0.0
    %98 = vmatpush1.xpose.msra.mxu0 %v95
    %99 = vmatprep.subr.mxu0 0.0
    %100 = vmatpush1.xpose.msra.mxu0 %v92
    %101 = vmatprep.subr.mxu0 0.0
    %102 = vmatpush1.xpose.msra.mxu0 %v89
    %103 = vmatprep.subr.mxu0 0.0
    %104 = vmatpush1.xpose.msra.mxu0 %v86
    %105 = vmatprep.subr.mxu0 0.0
    %106 = vmatpush1.xpose.msra.mxu0 %v83
    %107 = vmatprep.subr.mxu0 0.0
    %108 = vmatpush1.xpose.msra.mxu0 %v80
    %109 = vmatprep.subr.mxu0 0.0
    %110 = vmatpush1.xpose.msra.mxu0 %v77
    %111 = vmatprep.subr.mxu0 0.0
    %112 = vmatpush1.xpose.msra.mxu0 %v74
    %113 = vmatprep.subr.mxu0 0.0
    %114 = vmatpush1.xpose.msra.mxu0 %v71
    %115 = vmatprep.subr.mxu0 0.0
    %116 = vmatpush1.xpose.msra.mxu0 %v68
    %117 = vmatprep.subr.mxu0 0.0
    %118 = vmatpush1.xpose.msra.mxu0 %v65
    %119 = vmatprep.subr.mxu0 0.0
    %120 = vmatpush1.xpose.msra.mxu0 %v62
    %121 = vmatprep.subr.mxu0 0.0
    %122 = vmatpush1.xpose.msra.mxu0 %v59
    %123 = vmatprep.subr.mxu0 0.0
    %124 = vmatpush1.xpose.msra.mxu0 %v56
    %125 = vmatprep.subr.mxu0 0.0
    %126 = vmatpush1.xpose.msra.mxu0 %v53
    %127 = vmatprep.subr.mxu0 0.0
    %128 = vmatpush1.xpose.msra.mxu0 %v50
    %129 = vmatprep.subr.mxu0 0.0
    %130 = vmatpush2.xpose.msra.mxu0 0.0
    %131 = vmatprep.subr.mxu0 0.0
    %132 = vmatpush2.xpose.msra.mxu0 0.0
    %133 = vmatprep.subr.mxu0 0.0
    %134 = vmatpush2.xpose.msra.mxu0 0.0
    %135 = vmatprep.subr.mxu0 0.0
    %136 = vmatpush2.xpose.msra.mxu0 0.0
    %137 = vmatprep.subr.mxu0 0.0
    %138 = vmatpush2.xpose.msra.mxu0 0.0
    %139 = vmatprep.subr.mxu0 0.0
    %140 = vmatpush2.xpose.msra.mxu0 0.0
    %141 = vmatprep.subr.mxu0 0.0
    %142 = vmatpush2.xpose.msra.mxu0 0.0
    %143 = vmatprep.subr.mxu0 0.0
    %144 = vmatpush2.xpose.msra.mxu0 0.0
    %145 = vmatprep.subr.mxu0 0.0
    %146 = vmatpush2.xpose.msra.mxu0 0.0
    %147 = vmatprep.subr.mxu0 0.0
    %148 = vmatpush2.xpose.msra.mxu0 0.0
    %149 = vmatprep.subr.mxu0 0.0
    %150 = vmatpush2.xpose.msra.mxu0 0.0
    %151 = vmatprep.subr.mxu0 0.0
    %152 = vmatpush2.xpose.msra.mxu0 0.0
    %153 = vmatprep.subr.mxu0 0.0
    %154 = vmatpush2.xpose.msra.mxu0 0.0
    %155 = vmatprep.subr.mxu0 0.0
    %156 = vmatpush2.xpose.msra.mxu0 0.0
    %157 = vmatprep.subr.mxu0 0.0
    %158 = vmatpush2.xpose.msra.mxu0 0.0
    %159 = vmatprep.subr.mxu0 0.0
    %160 = vmatpush2.xpose.msra.mxu0 0.0
    %161 = vmatprep.mubr.f32.mxu0 0.0
    %162 = vmatmul.mubr.f32.gmra.mxu0 %v47
    %v163 = vpop.f32.mrf.mxu0
    %v164 = vadd.f32 %v43, %v163
    %v165 = vpop.f32.mrf.mxu0
    %166 = vdwg.mxu0
    %v167 = vmax.f32 %v164, 0.0
    %v168 = vld [vmem:[%s3] sm:$0xff]
    %v169 = vld [vmem:[%s3 + $0x8] sm:$0xff]
    %v170 = vld [vmem:[%s3 + $0x10] sm:$0xff]
    %v171 = vld [vmem:[%s3 + $0x18] sm:$0xff]
    %v172 = vld [vmem:[%s4] sm:$0x1]
    %v174 = vlaneseq
    %v175 = vshrl.u32 %v174, 7
    %v176 = vsub.s32 0, %v175
    %v177 = vrot.slane %v172, %v176
    %179 = vmatprep.subr.mxu0 0.0
    %180 = vmatpush1.xpose.msra.mxu0 0.0
    %181 = vmatprep.subr.mxu0 0.0
    %182 = vmatpush1.xpose.msra.mxu0 0.0
    %183 = vmatprep.subr.mxu0 0.0
    %184 = vmatpush1.xpose.msra.mxu0 0.0
    %185 = vmatprep.subr.mxu0 0.0
    %186 = vmatpush1.xpose.msra.mxu0 0.0
    %187 = vmatprep.subr.mxu0 0.0
    %188 = vmatpush1.xpose.msra.mxu0 0.0
    %189 = vmatprep.subr.mxu0 0.0
    %190 = vmatpush1.xpose.msra.mxu0 0.0
    %191 = vmatprep.subr.mxu0 0.0
    %192 = vmatpush1.xpose.msra.mxu0 0.0
    %193 = vmatprep.subr.mxu0 0.0
    %194 = vmatpush1.xpose.msra.mxu0 0.0
    %195 = vmatprep.subr.mxu0 0.0
    %196 = vmatpush1.xpose.msra.mxu0 0.0
    %197 = vmatprep.subr.mxu0 0.0
    %198 = vmatpush1.xpose.msra.mxu0 0.0
    %199 = vmatprep.subr.mxu0 0.0
    %200 = vmatpush1.xpose.msra.mxu0 0.0
    %201 = vmatprep.subr.mxu0 0.0
    %202 = vmatpush1.xpose.msra.mxu0 0.0
    %203 = vmatprep.subr.mxu0 0.0
    %204 = vmatpush1.xpose.msra.mxu0 %v171
    %205 = vmatprep.subr.mxu0 0.0
    %206 = vmatpush1.xpose.msra.mxu0 %v170
    %207 = vmatprep.subr.mxu0 0.0
    %208 = vmatpush1.xpose.msra.mxu0 %v169
    %209 = vmatprep.subr.mxu0 0.0
    %210 = vmatpush1.xpose.msra.mxu0 %v168
    %211 = vmatprep.subr.mxu0 0.0
    %212 = vmatpush2.xpose.msra.mxu0 0.0
    %213 = vmatprep.subr.mxu0 0.0
    %214 = vmatpush2.xpose.msra.mxu0 0.0
    %215 = vmatprep.subr.mxu0 0.0
    %216 = vmatpush2.xpose.msra.mxu0 0.0
    %217 = vmatprep.subr.mxu0 0.0
    %218 = vmatpush2.xpose.msra.mxu0 0.0
    %219 = vmatprep.subr.mxu0 0.0
    %220 = vmatpush2.xpose.msra.mxu0 0.0
    %221 = vmatprep.subr.mxu0 0.0
    %222 = vmatpush2.xpose.msra.mxu0 0.0
    %223 = vmatprep.subr.mxu0 0.0
    %224 = vmatpush2.xpose.msra.mxu0 0.0
    %225 = vmatprep.subr.mxu0 0.0
    %226 = vmatpush2.xpose.msra.mxu0 0.0
    %227 = vmatprep.subr.mxu0 0.0
    %228 = vmatpush2.xpose.msra.mxu0 0.0
    %229 = vmatprep.subr.mxu0 0.0
    %230 = vmatpush2.xpose.msra.mxu0 0.0
    %231 = vmatprep.subr.mxu0 0.0
    %232 = vmatpush2.xpose.msra.mxu0 0.0
    %233 = vmatprep.subr.mxu0 0.0
    %234 = vmatpush2.xpose.msra.mxu0 0.0
    %235 = vmatprep.subr.mxu0 0.0
    %236 = vmatpush2.xpose.msra.mxu0 0.0
    %237 = vmatprep.subr.mxu0 0.0
    %238 = vmatpush2.xpose.msra.mxu0 0.0
    %239 = vmatprep.subr.mxu0 0.0
    %240 = vmatpush2.xpose.msra.mxu0 0.0
    %241 = vmatprep.subr.mxu0 0.0
    %242 = vmatpush2.xpose.msra.mxu0 0.0
    %243 = vmatprep.mubr.f32.mxu0 0.0
    %244 = vmatmul.mubr.f32.gmra.mxu0 %v167
    %v245 = vpop.f32.mrf.mxu0
    %v246 = vadd.f32 %v177, %v245
    %v247 = vpop.f32.mrf.mxu0
    %248 = vdwg.mxu0
    %vm249 = vcmask 261120
    %250 = vst.msk [vmem:[#allocation2] sm:$0xff] %vm249, %v246
    // Predicated region
    $region22: #{tpu_custom_call.1} parent=1 // pred_check
      _
    $region23: #{tpu_custom_call.1} parent=1 // pred_check_branch
      %252 = sbr.rel (0) target = $region25
    $region24: #{tpu_custom_call.1} parent=1 // pred_region
      %s254 = ssub.s32 128, 128
      %255 = vsyncadd [#allocation3], %s254
      %s257 = sshll.u32 [#allocation2], 4
      %s258 = int_to_ptr.vmem [resolvable:$true] %s257
      %260 = dma.vmem_to_hbm [thread:$0]  %s258, 128, %s5, [#allocation3]
    $region25: #{tpu_custom_call.1} parent=1 // pred_fallthru
      _
    // Predicated region
    $region26: #{tpu_custom_call.1} parent=1 // pred_check
      _
    $region27: #{tpu_custom_call.1} parent=1 // pred_check_branch
      %262 = sbr.rel (0) target = $region29
    $region28: #{tpu_custom_call.1} parent=1 // pred_region
      %263 = dma.done [#allocation3], 128
    $region29: #{tpu_custom_call.1} parent=1 // pred_fallthru
      _
    %264 = vsyncpa [#allocation3], 1

</llo_original>
